<compile_context>
chip_gen: v7x
topology: tpu7x:2x2x1
jax: 0.10.0
libtpu: 0.0.40
codegen_flags: <defaults>
</compile_context>

<pallas_src>
import functools
import math

import jax
import jax.numpy as jnp
from jax.experimental import pallas as pl
from jax.experimental.pallas import tpu as pltpu

LN_EPS = 1e-5                    # nn.LayerNorm default
TILE_M = 256                     # row tile for projections / FFN
TILE_Q = 256                     # query-row tile for attention
MATMUL_DTYPE = jnp.bfloat16      # MXU operand dtype
ACT_DTYPE = jnp.bfloat16         # inter-kernel activation dtype
VMEM_LIMIT_BYTES = 64 * 1024 * 1024   # explicit scoped-VMEM limit (<= v7x physical)


def _row_tile(M, tile):
    # Full block when small (block dims equal to full array dims are always legal);
    # otherwise a multiple-of-8 tile with a cdiv grid.
    return M if M <= tile else tile


def _resident(shape):
    # Weight block whose index_map is constant across the grid: double-buffering
    # buys nothing, so single-buffer it (frees VMEM, esp. for the FFN weights).
    nd = len(shape)
    return pl.BlockSpec(shape, lambda *_: (0,) * nd, pipeline_mode=pl.Buffered(1))


def _cparams(*sem):
    return pltpu.CompilerParams(dimension_semantics=tuple(sem),
                                vmem_limit_bytes=VMEM_LIMIT_BYTES)


# --------------------------- Pallas kernels ---------------------------------

def _linear_kernel(x_ref, w_ref, b_ref, o_ref):
    # (TILE_M, K) @ (K, N) + (1, N); bf16 MXU operands, f32 accumulation,
    # bf16 store (inter-kernel activations are bf16).
    y = (jnp.dot(x_ref[...].astype(MATMUL_DTYPE), w_ref[...],
                 preferred_element_type=jnp.float32)
         + b_ref[...])
    o_ref[...] = y.astype(o_ref.dtype)


def _proj_add_ln_kernel(x_ref, w_ref, b_ref, r_ref, g_ref, be_ref, o_ref):
    # Fused: LayerNorm(x @ W_o + b_o + residual); math in f32.
    y = (jnp.dot(x_ref[...].astype(MATMUL_DTYPE), w_ref[...],
                 preferred_element_type=jnp.float32)
         + b_ref[...] + r_ref[...])
    mu = jnp.mean(y, axis=-1, keepdims=True)
    var = jnp.mean((y - mu) ** 2, axis=-1, keepdims=True)
    o_ref[...] = ((y - mu) * jax.lax.rsqrt(var + LN_EPS) * g_ref[...]
                  + be_ref[...]).astype(o_ref.dtype)


def _ffn_kernel(x_ref, w1_ref, b1_ref, w2_ref, b2_ref, g_ref, be_ref, o_ref):
    # Fused: LayerNorm(W2(relu(W1 x + b1)) + b2 + x)   (Conv1d k=1 == matmul)
    x = x_ref[...]
    h = (jnp.dot(x.astype(MATMUL_DTYPE), w1_ref[...],
                 preferred_element_type=jnp.float32) + b1_ref[...])
    h = jnp.maximum(h, 0.0)
    y = (jnp.dot(h.astype(MATMUL_DTYPE), w2_ref[...],
                 preferred_element_type=jnp.float32) + b2_ref[...])
    y = y + x
    mu = jnp.mean(y, axis=-1, keepdims=True)
    var = jnp.mean((y - mu) ** 2, axis=-1, keepdims=True)
    o_ref[...] = ((y - mu) * jax.lax.rsqrt(var + LN_EPS) * g_ref[...]
                  + be_ref[...]).astype(o_ref.dtype)


def _attn_kernel(*refs, n_head, has_mask, return_probs):
    # One (batch, q-row-tile) per grid step; all heads batched in one einsum.
    # Q is already pre-scaled by 1/sqrt(dk) (folded into the projection weights).
    q_ref, k_ref, v_ref = refs[0], refs[1], refs[2]
    idx = 3
    m_ref = refs[idx] if has_mask else None
    idx += 1 if has_mask else 0
    o_ref = refs[idx]
    a_ref = refs[idx + 1] if return_probs else None

    tq, D = q_ref.shape[1], q_ref.shape[2]
    Lk = k_ref.shape[1]
    dk = D // n_head

    q3 = q_ref[0].astype(MATMUL_DTYPE).reshape(tq, n_head, dk).transpose(1, 0, 2)
    k3 = k_ref[0].astype(MATMUL_DTYPE).reshape(Lk, n_head, dk).transpose(1, 0, 2)
    v3 = v_ref[0].astype(MATMUL_DTYPE).reshape(Lk, n_head, dk).transpose(1, 0, 2)

    # (H, tq, Lk) scores, f32 accumulation on the MXU.
    s = jnp.einsum('hqd,hkd->hqk', q3, k3, preferred_element_type=jnp.float32)
    if m_ref is not None:
        s = jnp.where(m_ref[0][None] != 0, s, -1e9)   # masked_fill(mask == 0, -1e9)
    s = s - jnp.max(s, axis=-1, keepdims=True)
    e = jnp.exp(s)
    p = e * pl.reciprocal(jnp.sum(e, axis=-1, keepdims=True), approx=True)
    if a_ref is not None:
        a_ref[0] = p.astype(a_ref.dtype)              # (H, tq, Lk) attention probs
    # (H, tq, dk) context, then one lane-dense (tq, D) store.
    o = jnp.einsum('hqk,hkd->hqd', p.astype(MATMUL_DTYPE), v3,
                   preferred_element_type=jnp.float32)
    o_ref[0] = o.transpose(1, 0, 2).reshape(tq, D).astype(o_ref.dtype)


# --------------------------- pallas_call wrappers ----------------------------

def linear(x, w_bf16, b):
    # x: (M, K) any float dtype, w: (K, N) bf16 (prepared), b: (N,) f32 -> (M, N) bf16
    M, K = x.shape
    N = w_bf16.shape[1]
    tm = _row_tile(M, TILE_M)
    return pl.pallas_call(
        _linear_kernel,
        out_shape=jax.ShapeDtypeStruct((M, N), ACT_DTYPE),
        grid=(pl.cdiv(M, tm),),
        in_specs=[pl.BlockSpec((tm, K), lambda i: (i, 0)),
                  _resident((K, N)),
                  pl.BlockSpec((1, N), lambda i: (0, 0))],
        out_specs=pl.BlockSpec((tm, N), lambda i: (i, 0)),
        compiler_params=_cparams("parallel"),
    )(x, w_bf16, b.reshape(1, N))


def proj_add_layernorm(x, w_bf16, b, residual, gamma, beta):
    # Fused output projection + residual + LayerNorm; f32 output (residual carrier).
    M, D = x.shape
    tm = _row_tile(M, TILE_M)
    return pl.pallas_call(
        _proj_add_ln_kernel,
        out_shape=jax.ShapeDtypeStruct((M, D), jnp.float32),
        grid=(pl.cdiv(M, tm),),
        in_specs=[pl.BlockSpec((tm, D), lambda i: (i, 0)),
                  _resident((D, D)),
                  pl.BlockSpec((1, D), lambda i: (0, 0)),
                  pl.BlockSpec((tm, D), lambda i: (i, 0)),
                  pl.BlockSpec((1, D), lambda i: (0, 0)),
                  pl.BlockSpec((1, D), lambda i: (0, 0))],
        out_specs=pl.BlockSpec((tm, D), lambda i: (i, 0)),
        compiler_params=_cparams("parallel"),
    )(x, w_bf16, b.reshape(1, D), residual, gamma.reshape(1, D), beta.reshape(1, D))


def pos_ffn(prep, x):
    B, L, D = x.shape
    Di = prep["w1"].shape[1]
    M = B * L
    tm = _row_tile(M, TILE_M)
    x2 = x.reshape(M, D)
    out = pl.pallas_call(
        _ffn_kernel,
        out_shape=jax.ShapeDtypeStruct((M, D), jnp.float32),
        grid=(pl.cdiv(M, tm),),
        in_specs=[pl.BlockSpec((tm, D), lambda i: (i, 0)),
                  _resident((D, Di)),
                  pl.BlockSpec((1, Di), lambda i: (0, 0)),
                  _resident((Di, D)),
                  pl.BlockSpec((1, D), lambda i: (0, 0)),
                  pl.BlockSpec((1, D), lambda i: (0, 0)),
                  pl.BlockSpec((1, D), lambda i: (0, 0))],
        out_specs=pl.BlockSpec((tm, D), lambda i: (i, 0)),
        compiler_params=_cparams("parallel"),
    )(x2,
      prep["w1"], prep["b1"].reshape(1, Di),
      prep["w2"], prep["b2"].reshape(1, D),
      prep["ln_g"].reshape(1, D), prep["ln_b"].reshape(1, D))
    return out.reshape(B, L, D)


def attention(q_src, q_col, k_src, k_col, v_src, v_col, mask, n_head, d_model,
              return_probs=True):
    # q_src: (B, Lq, *), k_src/v_src: (B, Lk, *); Q/K/V are column blocks q_col /
    # k_col / v_col (width d_model) of their source arrays -> fused projections
    # are consumed in place, without wrapper-side slicing copies.
    B, Lq = q_src.shape[0], q_src.shape[1]
    Lk = k_src.shape[1]
    D = d_model
    tq = _row_tile(Lq, TILE_Q)
    has_mask = mask is not None
    kern = functools.partial(_attn_kernel, n_head=n_head, has_mask=has_mask,
                             return_probs=return_probs)

    in_specs = [pl.BlockSpec((1, tq, D), lambda b, t, c=q_col: (b, t, c)),
                pl.BlockSpec((1, Lk, D), lambda b, t, c=k_col: (b, 0, c)),
                pl.BlockSpec((1, Lk, D), lambda b, t, c=v_col: (b, 0, c))]
    args = [q_src, k_src, v_src]
    if has_mask:
        in_specs.append(pl.BlockSpec((1, tq, Lk), lambda b, t: (b, t, 0)))
        args.append(mask)            # any dtype; kernel tests `mask != 0`

    if return_probs:
        out_shape = (jax.ShapeDtypeStruct((B, Lq, D), ACT_DTYPE),
                     jax.ShapeDtypeStruct((B, n_head, Lq, Lk), jnp.float32))
        out_specs = (pl.BlockSpec((1, tq, D), lambda b, t: (b, t, 0)),
                     pl.BlockSpec((1, n_head, tq, Lk), lambda b, t: (b, 0, t, 0)))
    else:
        out_shape = jax.ShapeDtypeStruct((B, Lq, D), ACT_DTYPE)
        out_specs = pl.BlockSpec((1, tq, D), lambda b, t: (b, t, 0))

    result = pl.pallas_call(
        kern,
        grid=(B, pl.cdiv(Lq, tq)),
        out_shape=out_shape,
        in_specs=in_specs,
        out_specs=out_specs,
        compiler_params=_cparams("parallel", "parallel"),
    )(*args)

    if return_probs:
        return result[0], result[1]
    return result, None


def self_attention(prep, x, mask, n_head, return_probs=True):
    # Fused QKV projection (one matmul, N = 3D) -> attention -> proj+residual+LN.
    B, L, D = x.shape
    x2 = x.reshape(B * L, D)
    qkv = linear(x2, prep["w_qkv"], prep["b_qkv"])            # (B*L, 3D) bf16
    if D % 128 == 0:
        qkv3 = qkv.reshape(B, L, 3 * D)                       # free reshape
        out, attn = attention(qkv3, 0, qkv3, 1, qkv3, 2, mask, n_head, D, return_probs)
    else:
        # Fallback for lane-unaligned d_model: wrapper-side slices (extra copies).
        q = qkv[:, :D].reshape(B, L, D)
        k = qkv[:, D:2 * D].reshape(B, L, D)
        v = qkv[:, 2 * D:].reshape(B, L, D)
        out, attn = attention(q, 0, k, 0, v, 0, mask, n_head, D, return_probs)
    out2d = proj_add_layernorm(out.reshape(B * L, D), prep["wo"], prep["bo"],
                               x2, prep["ln_g"], prep["ln_b"])
    return out2d.reshape(B, L, D), attn


def cross_attention(prep, q_in, kv_in, mask, n_head, return_probs=True):
    # Q projection + fused K|V projection (N = 2D) -> attention -> proj+residual+LN.
    B, Lq, D = q_in.shape
    Lk = kv_in.shape[1]
    q2 = q_in.reshape(B * Lq, D)
    q = linear(q2, prep["wq"], prep["bq"]).reshape(B, Lq, D)  # bf16, pre-scaled
    kv = linear(kv_in.reshape(B * Lk, D), prep["w_kv"], prep["b_kv"])  # (B*Lk, 2D)
    if D % 128 == 0:
        kv3 = kv.reshape(B, Lk, 2 * D)
        out, attn = attention(q, 0, kv3, 0, kv3, 1, mask, n_head, D, return_probs)
    else:
        k = kv[:, :D].reshape(B, Lk, D)
        v = kv[:, D:].reshape(B, Lk, D)
        out, attn = attention(q, 0, k, 0, v, 0, mask, n_head, D, return_probs)
    out2d = proj_add_layernorm(out.reshape(B * Lq, D), prep["wo"], prep["bo"],
                               q2, prep["ln_g"], prep["ln_b"])
    return out2d.reshape(B, Lq, D), attn


def decoder_layer(prep, dec_inputs, enc_outputs,
                  slf_attn_mask=None, dec_enc_attn_mask=None, *, n_head):
    dec_out, dec_slf_attn = self_attention(
        prep["slf_attn"], dec_inputs, slf_attn_mask, n_head)
    dec_out, dec_enc_attn = cross_attention(
        prep["enc_attn"], dec_out, enc_outputs, dec_enc_attn_mask, n_head)
    dec_out = pos_ffn(prep["ffn"], dec_out)
    return dec_out, dec_slf_attn, dec_enc_attn


# ---------------------- parameter init & one-time prep -----------------------

def init_params(key, d_model, d_inner):
    def dense(k, fan_in, fan_out):
        return 0.05 * jax.random.normal(k, (fan_in, fan_out), jnp.float32)

    keys = jax.random.split(key, 10)

    def mha(ks):
        return dict(
            wq=dense(ks[0], d_model, d_model), bq=jnp.zeros((d_model,), jnp.float32),
            wk=dense(ks[1], d_model, d_model), bk=jnp.zeros((d_model,), jnp.float32),
            wv=dense(ks[2], d_model, d_model), bv=jnp.zeros((d_model,), jnp.float32),
            wo=dense(ks[3], d_model, d_model), bo=jnp.zeros((d_model,), jnp.float32),
            ln_g=jnp.ones((d_model,), jnp.float32),
            ln_b=jnp.zeros((d_model,), jnp.float32),
        )

    return dict(
        slf_attn=mha(keys[0:4]),
        enc_attn=mha(keys[4:8]),
        ffn=dict(
            w1=dense(keys[8], d_model, d_inner), b1=jnp.zeros((d_inner,), jnp.float32),
            w2=dense(keys[9], d_inner, d_model), b2=jnp.zeros((d_model,), jnp.float32),
            ln_g=jnp.ones((d_model,), jnp.float32),
            ln_b=jnp.zeros((d_model,), jnp.float32),
        ),
    )


def prepare_params(params, n_head):
    # One-time prep (outside the forward path): fuse QKV / KV weights, fold the
    # 1/sqrt(dk) attention scale into the Q projection, cast weights to bf16.
    def prep_self(p):
        D = p["wq"].shape[0]
        sc = 1.0 / math.sqrt(D // n_head)
        return dict(
            w_qkv=jnp.concatenate([p["wq"] * sc, p["wk"], p["wv"]],
                                  axis=1).astype(MATMUL_DTYPE),
            b_qkv=jnp.concatenate([p["bq"] * sc, p["bk"], p["bv"]]).astype(jnp.float32),
            wo=p["wo"].astype(MATMUL_DTYPE), bo=p["bo"],
            ln_g=p["ln_g"], ln_b=p["ln_b"])

    def prep_cross(p):
        D = p["wq"].shape[0]
        sc = 1.0 / math.sqrt(D // n_head)
        return dict(
            wq=(p["wq"] * sc).astype(MATMUL_DTYPE),
            bq=(p["bq"] * sc).astype(jnp.float32),
            w_kv=jnp.concatenate([p["wk"], p["wv"]], axis=1).astype(MATMUL_DTYPE),
            b_kv=jnp.concatenate([p["bk"], p["bv"]]).astype(jnp.float32),
            wo=p["wo"].astype(MATMUL_DTYPE), bo=p["bo"],
            ln_g=p["ln_g"], ln_b=p["ln_b"])

    def prep_ffn(p):
        return dict(w1=p["w1"].astype(MATMUL_DTYPE), b1=p["b1"],
                    w2=p["w2"].astype(MATMUL_DTYPE), b2=p["b2"],
                    ln_g=p["ln_g"], ln_b=p["ln_b"])

    return dict(slf_attn=prep_self(params["slf_attn"]),
                enc_attn=prep_cross(params["enc_attn"]),
                ffn=prep_ffn(params["ffn"]))


# ------------------------------- demo ----------------------------------------

if __name__ == "__main__":
    # Small but lane-aligned shapes (d_model multiple of 128 -> fused Q/K/V are
    # consumed via column-block BlockSpecs, no wrapper slicing).
    B, L_DEC, L_ENC = 2, 8, 10
    D_MODEL, D_INNER, N_HEAD = 128, 256, 4

    root = jax.random.PRNGKey(0)
    k_par, k_dec, k_enc = jax.random.split(root, 3)

    params = init_params(k_par, D_MODEL, D_INNER)
    prep = prepare_params(params, N_HEAD)      # one-time: fuse + pre-scale + bf16

    dec_inputs = jax.random.normal(k_dec, (B, L_DEC, D_MODEL), jnp.float32)
    enc_outputs = jax.random.normal(k_enc, (B, L_ENC, D_MODEL), jnp.float32)

    # causal self-attention mask (1 = attend, 0 = masked); bf16 halves mask DMA bytes
    slf_attn_mask = jnp.broadcast_to(
        jnp.tril(jnp.ones((L_DEC, L_DEC), jnp.bfloat16))[None], (B, L_DEC, L_DEC))
    dec_enc_attn_mask = None  # attend to all encoder positions

    dec_out, slf_attn, enc_attn = decoder_layer(
        prep, dec_inputs, enc_outputs, slf_attn_mask, dec_enc_attn_mask,
        n_head=N_HEAD)

    jax.block_until_ready((dec_out, slf_attn, enc_attn))
    assert dec_out.shape == (B, L_DEC, D_MODEL) and dec_out.dtype == jnp.float32
    assert slf_attn.shape == (B, N_HEAD, L_DEC, L_DEC)
    assert enc_attn.shape == (B, N_HEAD, L_DEC, L_ENC)
    print("KERNEL_OK")
</pallas_src>

<mosaic_0001>
module attributes {stable_mosaic.version = 11 : i64} {
  func.func @_linear_kernel(%arg0: i32, %arg1: memref<16x128xf32, #tpu.memory_space<vmem>>, %arg2: memref<128x384xbf16, #tpu.memory_space<vmem>>, %arg3: memref<1x384xf32, #tpu.memory_space<vmem>>, %arg4: memref<16x384xbf16, #tpu.memory_space<vmem>>) attributes {dimension_semantics = [#tpu.dimension_semantics<parallel>], iteration_bounds = array<i64: 1>, scalar_prefetch = 0 : i64, scratch_operands = 0 : i64, tpu.core_type = #tpu.core_type<tc>, window_params = [{transform_indices = @transform_0, window_bounds = array<i64: 16, 128>}, {pipeline_mode = #tpu.pipeline_mode<synchronous>, transform_indices = @transform_1, window_bounds = array<i64: 128, 384>}, {pipeline_mode = #tpu.pipeline_mode<synchronous>, transform_indices = @transform_2, window_bounds = array<i64: 1, 384>}, {transform_indices = @transform_3, window_bounds = array<i64: 16, 384>}]} {
    %c0 = arith.constant 0 : index
    %c0_0 = arith.constant 0 : index
    %0 = vector.load %arg1[%c0, %c0_0] : memref<16x128xf32, #tpu.memory_space<vmem>>, vector<16x128xf32>
    %1 = arith.truncf %0 : vector<16x128xf32> to vector<16x128xbf16>
    %c0_1 = arith.constant 0 : index
    %c0_2 = arith.constant 0 : index
    %2 = vector.load %arg2[%c0_1, %c0_2] : memref<128x384xbf16, #tpu.memory_space<vmem>>, vector<128x384xbf16>
    %cst = arith.constant dense<0.000000e+00> : vector<16x384xf32>
    %3 = tpu.matmul %1, %2, %cst {dimension_numbers = #tpu.dot_dimension_numbers<[1], [0], [0], [1], [0, 0, 1, 1], [], []>} : vector<16x128xbf16>, vector<128x384xbf16>, vector<16x384xf32> -> vector<16x384xf32>
    %c0_3 = arith.constant 0 : index
    %c0_4 = arith.constant 0 : index
    %4 = vector.load %arg3[%c0_3, %c0_4] : memref<1x384xf32, #tpu.memory_space<vmem>>, vector<1x384xf32>
    %5 = vector.broadcast %4 : vector<1x384xf32> to vector<16x384xf32>
    %6 = arith.addf %3, %5 : vector<16x384xf32>
    %7 = arith.truncf %6 : vector<16x384xf32> to vector<16x384xbf16>
    %c0_5 = arith.constant 0 : index
    %c0_6 = arith.constant 0 : index
    %8 = vector.load %arg4[%c0_5, %c0_6] : memref<16x384xbf16, #tpu.memory_space<vmem>>, vector<16x384xbf16>
    tpu.vector_store %arg4[%c0_5, %c0_6], %7 {strides = array<i32>} : memref<16x384xbf16, #tpu.memory_space<vmem>>, vector<16x384xbf16>,
    return
  }
  func.func @transform_0(%arg0: i32) -> (i32, i32) {
    %c0_i32 = arith.constant 0 : i32
    %c0_i32_0 = arith.constant 0 : i32
    return %arg0, %c0_i32 : i32, i32
  }
  func.func @transform_1(%arg0: i32) -> (i32, i32) {
    %c0_i32 = arith.constant 0 : i32
    %c0_i32_0 = arith.constant 0 : i32
    %c0_i32_1 = arith.constant 0 : i32
    return %c0_i32, %c0_i32_0 : i32, i32
  }
  func.func @transform_2(%arg0: i32) -> (i32, i32) {
    %c0_i32 = arith.constant 0 : i32
    %c0_i32_0 = arith.constant 0 : i32
    %c0_i32_1 = arith.constant 0 : i32
    return %c0_i32, %c0_i32_0 : i32, i32
  }
  func.func @transform_3(%arg0: i32) -> (i32, i32) {
    %c0_i32 = arith.constant 0 : i32
    %c0_i32_0 = arith.constant 0 : i32
    return %arg0, %c0_i32 : i32, i32
  }
}

</mosaic_0001>

<llo_original>
// kernel: tpu_custom_call.1
$region0: #{tpu_custom_call.1}
  #allocation0 [shape = 'u32[]', space=smem, size = 0x4, offset = 0x4, fixed_abs, tag = 'smem constant byte address 0x4 - core index']
  #allocation1 [shape = 'u32[144,128]{1,0:T(1,128)}', space=vmem, size = 0x12000, scoped, tag = 'internal scratch']
  %s0 = inlined_call_operand.hbm [shape: f32[16,128], index: 0, kind: input, shape index: {}]
  %s1 = inlined_call_operand.hbm [shape: bf16[128,384], index: 1, kind: input, shape index: {}]
  %s2 = inlined_call_operand.hbm [shape: f32[1,384], index: 2, kind: input, shape index: {}]
  %s3 = inlined_call_operand.hbm [shape: bf16[16,384], index: 3, kind: output, shape index: {}]
  %s4 = sld [smem:[#allocation0]]
  $region34: #{tpu_custom_call.1} parent=0
    _
  %s6 = ssub.s32 1, %s4
  %s7 = scalar_select 0, %s6, %s4
  $region1: #{tpu_custom_call.1} parent=0
    #allocation2 [shape = 'u8[8192]{0}', space=vmem, size = 0x2000, scoped, tag = 'input window, operand 0, single buffered']
    #allocation3 [shape = 's32[1]{0}', space=sflag, size = 0x4, scoped, tag = 'scoped memory for tpu_custom_call.1']
    #allocation4 [shape = 's32[1]{0}', space=sflag, size = 0x4, scoped, tag = 'scoped memory for tpu_custom_call.1']
    #allocation5 [shape = 'u8[98304]{0}', space=vmem, size = 0x18000, scoped, tag = 'input window, operand 1, single buffered']
    #allocation6 [shape = 's32[1]{0}', space=sflag, size = 0x4, scoped, tag = 'scoped memory for tpu_custom_call.1']
    #allocation7 [shape = 'u8[1536]{0}', space=vmem, size = 0x800, scoped, tag = 'input window, operand 2, single buffered']
    #allocation8 [shape = 'u8[12288]{0}', space=vmem, size = 0x3000, scoped, tag = 'output window, operand 0, single buffered']
    %8 = vsyncpa [#allocation3], 0
    %9 = vsyncpa [#allocation6], 0
    %10 = vsyncpa [#allocation4], 0
    // Predicated region
    $region2: #{tpu_custom_call.1} parent=1 // pred_check
      _
    $region3: #{tpu_custom_call.1} parent=1 // pred_check_branch
      %12 = sbr.rel (0) target = $region5
    $region4: #{tpu_custom_call.1} parent=1 // pred_region
      %s14 = ssub.s32 256, 256
      %15 = vsyncadd [#allocation3], %s14
      %s16 = sshll.u32 [#allocation2], 4
      %s17 = int_to_ptr.vmem [resolvable:$true] %s16
      %22 = dma.hbm_to_vmem [thread:$0]  %s0, 256, %s17, [#allocation3], 128, 128, 8
    $region5: #{tpu_custom_call.1} parent=1 // pred_fallthru
      _
    // Predicated region
    $region6: #{tpu_custom_call.1} parent=1 // pred_check
      _
    $region7: #{tpu_custom_call.1} parent=1 // pred_check_branch
      %24 = sbr.rel (0) target = $region9
    $region8: #{tpu_custom_call.1} parent=1 // pred_region
      %s26 = ssub.s32 3072, 3072
      %27 = vsyncadd [#allocation6], %s26
      %s28 = sshll.u32 [#allocation5], 4
      %s29 = int_to_ptr.vmem [resolvable:$true] %s28
      %34 = dma.hbm_to_vmem [thread:$0]  %s1, 3072, %s29, [#allocation6], 192, 192, 12
    $region9: #{tpu_custom_call.1} parent=1 // pred_fallthru
      _
    // Predicated region
    $region10: #{tpu_custom_call.1} parent=1 // pred_check
      _
    $region11: #{tpu_custom_call.1} parent=1 // pred_check_branch
      %36 = sbr.rel (0) target = $region13
    $region12: #{tpu_custom_call.1} parent=1 // pred_region
      %s38 = ssub.s32 48, 48
      %39 = vsyncadd [#allocation6], %s38
      %s41 = sshll.u32 [#allocation7], 4
      %s42 = int_to_ptr.vmem [resolvable:$true] %s41
      %44 = dma.hbm_to_vmem [thread:$0]  %s2, 48, %s42, [#allocation6]
    $region13: #{tpu_custom_call.1} parent=1 // pred_fallthru
      _
    // Predicated region
    $region14: #{tpu_custom_call.1} parent=1 // pred_check
      _
    $region15: #{tpu_custom_call.1} parent=1 // pred_check_branch
      %46 = sbr.rel (0) target = $region17
    $region16: #{tpu_custom_call.1} parent=1 // pred_region
      %47 = dma.done [#allocation3], 256
    $region17: #{tpu_custom_call.1} parent=1 // pred_fallthru
      _
    // Predicated region
    $region18: #{tpu_custom_call.1} parent=1 // pred_check
      _
    $region19: #{tpu_custom_call.1} parent=1 // pred_check_branch
      %49 = sbr.rel (0) target = $region21
    $region20: #{tpu_custom_call.1} parent=1 // pred_region
      %50 = dma.done [#allocation6], 3072
    $region21: #{tpu_custom_call.1} parent=1 // pred_fallthru
      _
    // Predicated region
    $region22: #{tpu_custom_call.1} parent=1 // pred_check
      _
    $region23: #{tpu_custom_call.1} parent=1 // pred_check_branch
      %52 = sbr.rel (0) target = $region25
    $region24: #{tpu_custom_call.1} parent=1 // pred_region
      %53 = dma.done [#allocation6], 48
    $region25: #{tpu_custom_call.1} parent=1 // pred_fallthru
      _
    %v55 = vld [vmem:[#allocation2] sm:$0xff]
    %v56 = vld [vmem:[#allocation2 + $0x8] sm:$0xff]
    %v57 = vpack.c.bf16 %v56, %v55
    %v58 = vld [vmem:[#allocation5] sm:$0xff]
    %v59 = vld [vmem:[#allocation5 + $0x8] sm:$0xf]
    %v60 = vld [vmem:[#allocation5 + $0xc] sm:$0xff]
    %v61 = vld [vmem:[#allocation5 + $0x14] sm:$0xf]
    %v62 = vld [vmem:[#allocation5 + $0x18] sm:$0xff]
    %v63 = vld [vmem:[#allocation5 + $0x20] sm:$0xf]
    %v64 = vld [vmem:[#allocation5 + $0x24] sm:$0xff]
    %v65 = vld [vmem:[#allocation5 + $0x2c] sm:$0xf]
    %v66 = vld [vmem:[#allocation5 + $0x30] sm:$0xff]
    %v67 = vld [vmem:[#allocation5 + $0x38] sm:$0xf]
    %v68 = vld [vmem:[#allocation5 + $0x3c] sm:$0xff]
    %v69 = vld [vmem:[#allocation5 + $0x44] sm:$0xf]
    %v70 = vld [vmem:[#allocation5 + $0x48] sm:$0xff]
    %v71 = vld [vmem:[#allocation5 + $0x50] sm:$0xf]
    %v72 = vld [vmem:[#allocation5 + $0x54] sm:$0xff]
    %v73 = vld [vmem:[#allocation5 + $0x5c] sm:$0xf]
    %v74 = vld [vmem:[#allocation5 + $0x60] sm:$0xff]
    %v75 = vld [vmem:[#allocation5 + $0x68] sm:$0xf]
    %v76 = vld [vmem:[#allocation5 + $0x6c] sm:$0xff]
    %v77 = vld [vmem:[#allocation5 + $0x74] sm:$0xf]
    %v78 = vld [vmem:[#allocation5 + $0x78] sm:$0xff]
    %v79 = vld [vmem:[#allocation5 + $0x80] sm:$0xf]
    %v80 = vld [vmem:[#allocation5 + $0x84] sm:$0xff]
    %v81 = vld [vmem:[#allocation5 + $0x8c] sm:$0xf]
    %v82 = vld [vmem:[#allocation5 + $0x90] sm:$0xff]
    %v83 = vld [vmem:[#allocation5 + $0x98] sm:$0xf]
    %v84 = vld [vmem:[#allocation5 + $0x9c] sm:$0xff]
    %v85 = vld [vmem:[#allocation5 + $0xa4] sm:$0xf]
    %v86 = vld [vmem:[#allocation5 + $0xa8] sm:$0xff]
    %v87 = vld [vmem:[#allocation5 + $0xb0] sm:$0xf]
    %v88 = vld [vmem:[#allocation5 + $0xb4] sm:$0xff]
    %v89 = vld [vmem:[#allocation5 + $0xbc] sm:$0xf]
    %v90 = vld [vmem:[#allocation7] sm:$0x7]
    %v92 = vlaneseq
    %v93 = vshrl.u32 %v92, 7
    %v94 = vsub.s32 0, %v93
    %v95 = vrot.slane %v90, %v94
    %v96 = vlaneseq
    %v97 = vshrl.u32 %v96, 7
    %v98 = vsub.s32 1, %v97
    %v99 = vrot.slane %v90, %v98
    %v100 = vlaneseq
    %v101 = vshrl.u32 %v100, 7
    %v102 = vsub.s32 2, %v101
    %v103 = vrot.slane %v90, %v102
    %v139 = vunpack.c.l.b16 %v58
    %v140 = vunpack.c.h.b16 %v58
    %v141 = vunpack.c.l.b16 %v59
    %v142 = vunpack.c.l.b16 %v60
    %v143 = vunpack.c.h.b16 %v60
    %v144 = vunpack.c.l.b16 %v61
    %v145 = vunpack.c.l.b16 %v62
    %v146 = vunpack.c.h.b16 %v62
    %v147 = vunpack.c.l.b16 %v63
    %v148 = vunpack.c.l.b16 %v64
    %v149 = vunpack.c.h.b16 %v64
    %v150 = vunpack.c.l.b16 %v65
    %v151 = vunpack.c.l.b16 %v66
    %v152 = vunpack.c.h.b16 %v66
    %v153 = vunpack.c.l.b16 %v67
    %v154 = vunpack.c.l.b16 %v68
    %v155 = vunpack.c.h.b16 %v68
    %v156 = vunpack.c.l.b16 %v69
    %v157 = vunpack.c.l.b16 %v70
    %v158 = vunpack.c.h.b16 %v70
    %v159 = vunpack.c.l.b16 %v71
    %v160 = vunpack.c.l.b16 %v72
    %v161 = vunpack.c.h.b16 %v72
    %v162 = vunpack.c.l.b16 %v73
    %v163 = vunpack.c.l.b16 %v74
    %v164 = vunpack.c.h.b16 %v74
    %v165 = vunpack.c.l.b16 %v75
    %v166 = vunpack.c.l.b16 %v76
    %v167 = vunpack.c.h.b16 %v76
    %v168 = vunpack.c.l.b16 %v77
    %v169 = vunpack.c.l.b16 %v78
    %v170 = vunpack.c.h.b16 %v78
    %v171 = vunpack.c.l.b16 %v79
    %v172 = vunpack.c.l.b16 %v80
    %v173 = vunpack.c.h.b16 %v80
    %v174 = vunpack.c.l.b16 %v81
    %v175 = vunpack.c.l.b16 %v82
    %v176 = vunpack.c.h.b16 %v82
    %v177 = vunpack.c.l.b16 %v83
    %v178 = vunpack.c.l.b16 %v84
    %v179 = vunpack.c.h.b16 %v84
    %v180 = vunpack.c.l.b16 %v85
    %v181 = vunpack.c.l.b16 %v86
    %v182 = vunpack.c.h.b16 %v86
    %v183 = vunpack.c.l.b16 %v87
    %v184 = vunpack.c.l.b16 %v88
    %v185 = vunpack.c.h.b16 %v88
    %v186 = vunpack.c.l.b16 %v89
    %v187 = vpack.c.b16 %v142, %v139
    %v188 = vpack.c.b16 %v143, %v140
    %v189 = vpack.c.b16 %v144, %v141
    %v190 = vpack.c.b16 %v148, %v145
    %v191 = vpack.c.b16 %v149, %v146
    %v192 = vpack.c.b16 %v150, %v147
    %v193 = vpack.c.b16 %v154, %v151
    %v194 = vpack.c.b16 %v155, %v152
    %v195 = vpack.c.b16 %v156, %v153
    %v196 = vpack.c.b16 %v160, %v157
    %v197 = vpack.c.b16 %v161, %v158
    %v198 = vpack.c.b16 %v162, %v159
    %v199 = vpack.c.b16 %v166, %v163
    %v200 = vpack.c.b16 %v167, %v164
    %v201 = vpack.c.b16 %v168, %v165
    %v202 = vpack.c.b16 %v172, %v169
    %v203 = vpack.c.b16 %v173, %v170
    %v204 = vpack.c.b16 %v174, %v171
    %v205 = vpack.c.b16 %v178, %v175
    %v206 = vpack.c.b16 %v179, %v176
    %v207 = vpack.c.b16 %v180, %v177
    %v208 = vpack.c.b16 %v184, %v181
    %v209 = vpack.c.b16 %v185, %v182
    %v210 = vpack.c.b16 %v186, %v183
    %235 = vmatprep.subr.bf16.mxu0 %v188
    %236 = vmatpush1.bf16.msra.mxu0 %v187
    %237 = vmatprep.subr.bf16.mxu0 %v191
    %238 = vmatpush1.bf16.msra.mxu0 %v190
    %239 = vmatprep.subr.bf16.mxu0 %v194
    %240 = vmatpush1.bf16.msra.mxu0 %v193
    %241 = vmatprep.subr.bf16.mxu0 %v197
    %242 = vmatpush1.bf16.msra.mxu0 %v196
    %243 = vmatprep.subr.bf16.mxu0 %v200
    %244 = vmatpush1.bf16.msra.mxu0 %v199
    %245 = vmatprep.subr.bf16.mxu0 %v203
    %246 = vmatpush1.bf16.msra.mxu0 %v202
    %247 = vmatprep.subr.bf16.mxu0 %v206
    %248 = vmatpush1.bf16.msra.mxu0 %v205
    %249 = vmatprep.subr.bf16.mxu0 %v209
    %250 = vmatpush1.bf16.msra.mxu0 %v208
    %251 = vmatprep.subr.bf16.mxu0 0
    %252 = vmatpush1.bf16.msra.mxu0 0
    %253 = vmatprep.subr.bf16.mxu0 0
    %254 = vmatpush1.bf16.msra.mxu0 0
    %255 = vmatprep.subr.bf16.mxu0 0
    %256 = vmatpush1.bf16.msra.mxu0 0
    %257 = vmatprep.subr.bf16.mxu0 0
    %258 = vmatpush1.bf16.msra.mxu0 0
    %259 = vmatprep.subr.bf16.mxu0 0
    %260 = vmatpush1.bf16.msra.mxu0 0
    %261 = vmatprep.subr.bf16.mxu0 0
    %262 = vmatpush1.bf16.msra.mxu0 0
    %263 = vmatprep.subr.bf16.mxu0 0
    %264 = vmatpush1.bf16.msra.mxu0 0
    %265 = vmatprep.subr.bf16.mxu0 0
    %266 = vmatpush1.bf16.msra.mxu0 0
    %267 = vmatprep.mubr.bf16.mxu0 0
    %268 = vmatmul.mubr.bf16.gmra.mrb[0].mxu0 %v57
    %v269 = vpop.f32.mrb[0].mxu0
    %v270 = vadd.f32 %v95, %v269
    %v271 = vpop.f32.mrb[0].mxu0
    %v272 = vadd.f32 %v99, %v271
    %v273 = vpop.f32.mrb[0].mxu0
    %v274 = vadd.f32 %v95, %v273
    %v275 = vpop.f32.mrb[0].mxu0
    %v276 = vadd.f32 %v99, %v275
    %277 = vdwg.mxu0
    %278 = vmatprep.subr.bf16.mxu0 0
    %279 = vmatpush1.bf16.msra.mxu0 %v189
    %280 = vmatprep.subr.bf16.mxu0 0
    %281 = vmatpush1.bf16.msra.mxu0 %v192
    %282 = vmatprep.subr.bf16.mxu0 0
    %283 = vmatpush1.bf16.msra.mxu0 %v195
    %284 = vmatprep.subr.bf16.mxu0 0
    %285 = vmatpush1.bf16.msra.mxu0 %v198
    %286 = vmatprep.subr.bf16.mxu0 0
    %287 = vmatpush1.bf16.msra.mxu0 %v201
    %288 = vmatprep.subr.bf16.mxu0 0
    %289 = vmatpush1.bf16.msra.mxu0 %v204
    %290 = vmatprep.subr.bf16.mxu0 0
    %291 = vmatpush1.bf16.msra.mxu0 %v207
    %292 = vmatprep.subr.bf16.mxu0 0
    %293 = vmatpush1.bf16.msra.mxu0 %v210
    %294 = vmatprep.subr.bf16.mxu0 0
    %295 = vmatpush1.bf16.msra.mxu0 0
    %296 = vmatprep.subr.bf16.mxu0 0
    %297 = vmatpush1.bf16.msra.mxu0 0
    %298 = vmatprep.subr.bf16.mxu0 0
    %299 = vmatpush1.bf16.msra.mxu0 0
    %300 = vmatprep.subr.bf16.mxu0 0
    %301 = vmatpush1.bf16.msra.mxu0 0
    %302 = vmatprep.subr.bf16.mxu0 0
    %303 = vmatpush1.bf16.msra.mxu0 0
    %304 = vmatprep.subr.bf16.mxu0 0
    %305 = vmatpush1.bf16.msra.mxu0 0
    %306 = vmatprep.subr.bf16.mxu0 0
    %307 = vmatpush1.bf16.msra.mxu0 0
    %308 = vmatprep.subr.bf16.mxu0 0
    %309 = vmatpush1.bf16.msra.mxu0 0
    %310 = vmatprep.mubr.bf16.mxu0 0
    %311 = vmatmul.mubr.bf16.gmra.mrb[0].mxu0 %v57
    %v312 = vpop.f32.mrb[0].mxu0
    %v313 = vadd.f32 %v103, %v312
    %v314 = vpop.f32.mrb[0].mxu0
    %v315 = vpop.f32.mrb[0].mxu0
    %v316 = vadd.f32 %v103, %v315
    %v317 = vpop.f32.mrb[0].mxu0
    %318 = vdwg.mxu0
    %v319 = vpack.c.bf16 %v274, %v270
    %v320 = vpack.c.bf16 %v276, %v272
    %v321 = vpack.c.bf16 %v316, %v313
    %v325 = vunpack.c.l.b16 %v319
    %v326 = vunpack.c.l.b16 %v320
    %v327 = vunpack.c.l.b16 %v321
    %v328 = vunpack.c.h.b16 %v319
    %v329 = vunpack.c.h.b16 %v320
    %v330 = vunpack.c.h.b16 %v321
    %v331 = vpack.c.b16 %v326, %v325
    %v332 = vpack.c.b16 %v327, %v327
    %v333 = vpack.c.b16 %v329, %v328
    %v334 = vpack.c.b16 %v330, %v330
    %339 = vst [vmem:[#allocation8] sm:$0xff] %v331
    %340 = vst [vmem:[#allocation8 + $0x8] sm:$0xf] %v332
    %341 = vst [vmem:[#allocation8 + $0xc] sm:$0xff] %v333
    %342 = vst [vmem:[#allocation8 + $0x14] sm:$0xf] %v334
    // Predicated region
    $region26: #{tpu_custom_call.1} parent=1 // pred_check
      _
    $region27: #{tpu_custom_call.1} parent=1 // pred_check_branch
      %344 = sbr.rel (0) target = $region29
    $region28: #{tpu_custom_call.1} parent=1 // pred_region
      %s346 = ssub.s32 384, 384
      %347 = vsyncadd [#allocation4], %s346
      %s348 = sshll.u32 [#allocation8], 4
      %s349 = int_to_ptr.vmem [resolvable:$true] %s348
      %354 = dma.vmem_to_hbm [thread:$0]  %s349, 384, %s3, [#allocation4], 192, 192, 12
    $region29: #{tpu_custom_call.1} parent=1 // pred_fallthru
      _
    // Predicated region
    $region30: #{tpu_custom_call.1} parent=1 // pred_check
      _
    $region31: #{tpu_custom_call.1} parent=1 // pred_check_branch
      %356 = sbr.rel (0) target = $region33
    $region32: #{tpu_custom_call.1} parent=1 // pred_region
      %357 = dma.done [#allocation4], 384
    $region33: #{tpu_custom_call.1} parent=1 // pred_fallthru
      _
    %358 = vsyncpa [#allocation3], 1
    %359 = vsyncpa [#allocation6], 1
    %360 = vsyncpa [#allocation4], 1

</llo_original>
